<compile_context>
chip_gen: v7x
topology: tpu7x:2x2x1
jax: 0.10.0
libtpu: 0.0.40
codegen_flags: <defaults>
</compile_context>

<pallas_src>
import functools

import jax
import jax.numpy as jnp
from jax.experimental import pallas as pl
from jax.experimental.pallas import tpu as pltpu

_LANE_BLOCK = 1024          # lane-dense slab width (multiple of 128)
_SMALL_BYTES = 256 * 1024   # below this, a fused XLA FMA beats kernel launch


def _min_sublane(dtype) -> int:
    itemsize = jnp.dtype(dtype).itemsize
    return {4: 8, 2: 16, 1: 32}.get(itemsize, 8)


@functools.lru_cache(maxsize=1)
def _chip_policy():
    """Returns (per-array tile bytes, split two-way?, vmem_limit_bytes or None)."""
    try:
        kind = jax.devices()[0].device_kind.lower()
    except Exception:  # pragma: no cover - defensive
        kind = ""
    if "7" in kind:
        # v7x: 2 TensorCores share the grid ("parallel" axis); 64 MiB VMEM/TC.
        # 3 streams x 2 buffers x 6 MiB = 36 MiB < 48 MiB limit < 64 MiB phys.
        return 6 * 1024 * 1024, True, 48 << 20
    if "v6" in kind:
        # v6e: 1 TC; 3 x 2 x 4 MiB = 24 MiB < 32 MiB scoped default.
        return 4 * 1024 * 1024, False, None
    # v5e / unknown: conservative.  3 x 2 x 2 MiB = 12 MiB < 16 MiB scoped.
    return 2 * 1024 * 1024, False, None


def _choose_block_rows(rows_total, itemsize, min_sub, tile_bytes, split_two_way):
    # Largest tile <= tile_bytes, rounded to the dtype's sublane packing.
    target = max(min_sub, tile_bytes // (_LANE_BLOCK * itemsize))
    target = (target // min_sub) * min_sub
    block_rows = min(rows_total, target)
    # On 2-TC chips, make sure the "parallel" axis has >= 2 near-equal blocks
    # whenever there is enough work so both TensorCores get a share.
    if split_two_way and block_rows == rows_total and rows_total >= 2 * min_sub:
        half = -(-rows_total // 2)                       # ceil(rows/2)
        half = ((half + min_sub - 1) // min_sub) * min_sub
        block_rows = min(half, rows_total)
    return block_rows


def _loss_update_kernel(factor_ref, loss_ref, x_ref, out_ref):
    # factor_ref: SMEM (1, 1) f32 scalar; loss/x/out: lane-dense VMEM tiles.
    f = factor_ref[0, 0]
    acc = loss_ref[...].astype(jnp.float32) + x_ref[...].astype(jnp.float32) * f
    out_ref[...] = acc.astype(out_ref.dtype)


@functools.partial(jax.jit, donate_argnums=(0,))
def loss_update(loss, x, factor):
    """Computes loss + x * factor (in-place on the donated `loss` buffer)."""
    assert x.shape == loss.shape and x.dtype == loss.dtype
    orig_shape = loss.shape
    dtype = loss.dtype
    itemsize = jnp.dtype(dtype).itemsize
    total = loss.size

    # Fast path: tiny tensors (typical per-batch loss scalars/vectors) or
    # totals that are not a whole number of 1024-lane rows.  A fused XLA FMA is
    # already at the HBM roofline for this memory-bound op, and skipping the
    # kernel avoids any pad / reshape / slice HBM copies for ragged sizes.
    if total * itemsize < _SMALL_BYTES or total % _LANE_BLOCK != 0:
        f = jnp.asarray(factor, dtype=jnp.float32)
        return (loss.astype(jnp.float32) + x.astype(jnp.float32) * f).astype(dtype)

    min_sub = _min_sublane(dtype)
    tile_bytes, split_two_way, vmem_limit = _chip_policy()

    rows_total = total // _LANE_BLOCK
    loss_slab = loss.reshape(rows_total, _LANE_BLOCK)   # no-copy bitcast
    x_slab = x.reshape(rows_total, _LANE_BLOCK)

    block_rows = _choose_block_rows(rows_total, itemsize, min_sub,
                                    tile_bytes, split_two_way)
    grid = (pl.cdiv(rows_total, block_rows),)            # ragged last block OK

    factor_arr = jnp.reshape(jnp.asarray(factor, dtype=jnp.float32), (1, 1))

    out_slab = pl.pallas_call(
        _loss_update_kernel,
        out_shape=jax.ShapeDtypeStruct((rows_total, _LANE_BLOCK), dtype),
        grid_spec=pl.GridSpec(
            grid=grid,
            in_specs=[
                pl.BlockSpec(memory_space=pltpu.SMEM),                       # factor
                pl.BlockSpec((block_rows, _LANE_BLOCK), lambda i: (i, 0)),   # loss
                pl.BlockSpec((block_rows, _LANE_BLOCK), lambda i: (i, 0)),   # x
            ],
            out_specs=pl.BlockSpec((block_rows, _LANE_BLOCK), lambda i: (i, 0)),
        ),
        # Reuse the donated loss buffer (arg index 1: factor=0, loss=1, x=2) as
        # the output: true in-place `batch['loss'] = ...` semantics.
        input_output_aliases={1: 0},
        compiler_params=pltpu.CompilerParams(
            dimension_semantics=("parallel",),
            vmem_limit_bytes=vmem_limit,
        ),
    )(factor_arr, loss_slab, x_slab)

    return out_slab.reshape(orig_shape)


class LossManager:
    """JAX/Pallas port of the PyTorch LossManager module."""

    def __init__(self, logger, sizes, input, modes, **kwargs):
        # check_leftargs: no leftover kwargs expected in this synthetic setup.
        assert not kwargs, f"unexpected kwargs: {kwargs}"
        del logger, sizes
        self.input = input
        self.modes = modes
        # TODO(synk): factor() is abstract (NotImplementedError) in the reference
        # module; use a deterministic constant scalar factor here.
        self._factor_value = 0.5

    def factor(self, batch):
        return self._factor_value

    def forward(self, batch, mode):
        if mode in self.modes:
            batch["loss"] = loss_update(
                batch["loss"], batch[self.input], self.factor(batch)
            )
        return batch

    __call__ = forward


if __name__ == "__main__":
    key = jax.random.PRNGKey(0)
    keys = jax.random.split(key, 8)

    mgr = LossManager(logger=None, sizes=None, input="kl_term", modes=("train",))
    F = mgr._factor_value

    # Case 1: f32 slab big enough for the Pallas path (256 KiB, 1024-multiple),
    # exercised through the module forward().  NB: loss1 is donated by the
    # call, so the reference is materialized first and loss1 never reused.
    B, D = 64, 1024
    loss1 = jax.random.normal(keys[0], (B, D), dtype=jnp.float32)
    x1 = jax.random.normal(keys[1], (B, D), dtype=jnp.float32)
    ref1 = jax.block_until_ready(loss1 + x1 * F)
    batch = {"loss": loss1, "kl_term": x1}
    batch = mgr(batch, mode="train")
    out1 = jax.block_until_ready(batch["loss"])
    assert out1.shape == (B, D)
    assert jnp.allclose(out1, ref1, atol=1e-6, rtol=1e-6), "f32 kernel mismatch"

    # Case 2: bf16 slab through the Pallas path (f32 accumulate, cast on store).
    B2, D2 = 128, 1024
    loss2 = jax.random.normal(keys[2], (B2, D2), dtype=jnp.bfloat16)
    x2 = jax.random.normal(keys[3], (B2, D2), dtype=jnp.bfloat16)
    ref2 = jax.block_until_ready(
        loss2.astype(jnp.float32) + x2.astype(jnp.float32) * F)
    out2 = jax.block_until_ready(loss_update(loss2, x2, F))
    assert jnp.allclose(out2.astype(jnp.float32), ref2, atol=1e-2, rtol=1e-2), \
        "bf16 kernel mismatch"

    # Case 3: small module-sized tensor -> XLA fast path (no kernel launch).
    loss3 = jax.random.normal(keys[4], (2, 4, 16, 16), dtype=jnp.float32)
    x3 = jax.random.normal(keys[5], (2, 4, 16, 16), dtype=jnp.float32)
    ref3 = jax.block_until_ready(loss3 + x3 * F)
    out3 = jax.block_until_ready(loss_update(loss3, x3, F))
    assert jnp.allclose(out3, ref3, atol=1e-6, rtol=1e-6), "small fast-path mismatch"

    # Case 4: ragged total (not a multiple of 1024) -> XLA fast path.
    loss4 = jax.random.normal(keys[6], (7, 300), dtype=jnp.float32)
    x4 = jax.random.normal(keys[7], (7, 300), dtype=jnp.float32)
    ref4 = jax.block_until_ready(loss4 + x4 * F)
    out4 = jax.block_until_ready(loss_update(loss4, x4, F))
    assert jnp.allclose(out4, ref4, atol=1e-6, rtol=1e-6), "ragged fast-path mismatch"

    # Case 5: mode not in self.modes -> loss untouched (same object, no call).
    loss5 = jnp.ones((8, 8), dtype=jnp.float32)
    batch5 = {"loss": loss5, "kl_term": jnp.ones((8, 8), dtype=jnp.float32)}
    batch5 = mgr(batch5, mode="eval")
    assert batch5["loss"] is loss5

    print("KERNEL_OK")
</pallas_src>

<mosaic_0001>
module attributes {stable_mosaic.version = 11 : i64} {
  func.func @_loss_update_kernel(%arg0: i32, %arg1: memref<1x1xf32, #tpu.memory_space<smem>>, %arg2: memref<64x1024xf32, #tpu.memory_space<vmem>>, %arg3: memref<64x1024xf32, #tpu.memory_space<vmem>>, %arg4: memref<64x1024xf32, #tpu.memory_space<vmem>>) attributes {dimension_semantics = [#tpu.dimension_semantics<parallel>], iteration_bounds = array<i64: 1>, scalar_prefetch = 0 : i64, scratch_operands = 0 : i64, tpu.core_type = #tpu.core_type<tc>, window_params = [{transform_indices = @transform_0, window_bounds = array<i64: 1, 1>}, {transform_indices = @transform_1, window_bounds = array<i64: 64, 1024>}, {transform_indices = @transform_2, window_bounds = array<i64: 64, 1024>}, {transform_indices = @transform_3, window_bounds = array<i64: 64, 1024>}]} {
    %c0 = arith.constant 0 : index
    %c0_0 = arith.constant 0 : index
    %0 = memref.load %arg1[%c0, %c0_0] : memref<1x1xf32, #tpu.memory_space<smem>>
    %c0_1 = arith.constant 0 : index
    %c0_2 = arith.constant 0 : index
    %1 = vector.load %arg2[%c0_1, %c0_2] : memref<64x1024xf32, #tpu.memory_space<vmem>>, vector<64x1024xf32>
    %c0_3 = arith.constant 0 : index
    %c0_4 = arith.constant 0 : index
    %2 = vector.load %arg3[%c0_3, %c0_4] : memref<64x1024xf32, #tpu.memory_space<vmem>>, vector<64x1024xf32>
    %3 = vector.broadcast %0 : f32 to vector<64x1024xf32>
    %4 = arith.mulf %2, %3 : vector<64x1024xf32>
    %5 = arith.addf %1, %4 : vector<64x1024xf32>
    %c0_5 = arith.constant 0 : index
    %c0_6 = arith.constant 0 : index
    %6 = vector.load %arg4[%c0_5, %c0_6] : memref<64x1024xf32, #tpu.memory_space<vmem>>, vector<64x1024xf32>
    tpu.vector_store %arg4[%c0_5, %c0_6], %5 {strides = array<i32>} : memref<64x1024xf32, #tpu.memory_space<vmem>>, vector<64x1024xf32>,
    return
  }
  func.func @transform_0(%arg0: i32) -> (i32, i32) {
    %c0_i32 = arith.constant 0 : i32
    %c0_i32_0 = arith.constant 0 : i32
    %c0_i32_1 = arith.constant 0 : i32
    return %c0_i32, %c0_i32_0 : i32, i32
  }
  func.func @transform_1(%arg0: i32) -> (i32, i32) {
    %c0_i32 = arith.constant 0 : i32
    %c0_i32_0 = arith.constant 0 : i32
    return %arg0, %c0_i32 : i32, i32
  }
  func.func @transform_2(%arg0: i32) -> (i32, i32) {
    %c0_i32 = arith.constant 0 : i32
    %c0_i32_0 = arith.constant 0 : i32
    return %arg0, %c0_i32 : i32, i32
  }
  func.func @transform_3(%arg0: i32) -> (i32, i32) {
    %c0_i32 = arith.constant 0 : i32
    %c0_i32_0 = arith.constant 0 : i32
    return %arg0, %c0_i32 : i32, i32
  }
}

</mosaic_0001>

<llo_original>
// kernel: loss_update.1
$region0: #{loss_update.1}
  #allocation0 [shape = 'u32[]', space=smem, size = 0x4, offset = 0x4, fixed_abs, tag = 'smem constant byte address 0x4 - core index']
  #allocation1 [shape = 'u32[144,128]{1,0:T(1,128)}', space=vmem, size = 0x12000, scoped, tag = 'internal scratch']
  #allocation2 [shape = 'f32[1,1]{1,0:T(1,128)S(6)}', space=smem, size = 0x200, scoped, tag = 'scoped memory for loss_update.1']
  %s0 = inlined_call_operand.<no memory space> [shape: f32[1,1], index: 0, kind: input, shape index: {}]
  %s1 = inlined_call_operand.hbm [shape: f32[64,1024], index: 1, kind: input, shape index: {}, may-alias: {1,3}]
  %s2 = inlined_call_operand.hbm [shape: f32[64,1024], index: 2, kind: input, shape index: {}]
  %s3 = inlined_call_operand.hbm [shape: f32[64,1024], index: 3, kind: output, shape index: {}, may-alias: {1,3}]
  %s4 = sld [smem:[#allocation0]]
  $region30: #{loss_update.1} parent=0
    _
  %s6 = ssub.s32 1, %s4
  %s7 = scalar_select 0, %s6, %s4
  %8 = sst [smem:[#allocation2]] %s0
  $region1: #{loss_update.1} parent=0
    #allocation3 [shape = 'u8[262144]{0}', space=vmem, size = 0x40000, scoped, tag = 'input window, operand 1, single buffered']
    #allocation4 [shape = 's32[1]{0}', space=sflag, size = 0x4, scoped, tag = 'scoped memory for loss_update.1']
    #allocation5 [shape = 's32[1]{0}', space=sflag, size = 0x4, scoped, tag = 'scoped memory for loss_update.1']
    #allocation6 [shape = 'u8[262144]{0}', space=vmem, size = 0x40000, scoped, tag = 'input window, operand 2, single buffered']
    #allocation7 [shape = 's32[1]{0}', space=sflag, size = 0x4, scoped, tag = 'scoped memory for loss_update.1']
    #allocation8 [shape = 'u8[262144]{0}', space=vmem, size = 0x40000, scoped, tag = 'output window, operand 0, single buffered']
    %9 = vsyncpa [#allocation4], 0
    %10 = vsyncpa [#allocation7], 0
    %11 = vsyncpa [#allocation5], 0
    // Predicated region
    $region2: #{loss_update.1} parent=1 // pred_check
      _
    $region3: #{loss_update.1} parent=1 // pred_check_branch
      %13 = sbr.rel (0) target = $region5
    $region4: #{loss_update.1} parent=1 // pred_region
      _
    $region5: #{loss_update.1} parent=1 // pred_fallthru
      _
    // Predicated region
    $region6: #{loss_update.1} parent=1 // pred_check
      _
    $region7: #{loss_update.1} parent=1 // pred_check_branch
      %15 = sbr.rel (0) target = $region9
    $region8: #{loss_update.1} parent=1 // pred_region
      %s17 = ssub.s32 8192, 8192
      %18 = vsyncadd [#allocation4], %s17
      %s19 = sshll.u32 [#allocation3], 4
      %s20 = int_to_ptr.vmem [resolvable:$true] %s19
      %25 = dma.hbm_to_vmem [thread:$0]  %s1, 8192, %s20, [#allocation4], 1024, 1024, 64
    $region9: #{loss_update.1} parent=1 // pred_fallthru
      _
    // Predicated region
    $region10: #{loss_update.1} parent=1 // pred_check
      _
    $region11: #{loss_update.1} parent=1 // pred_check_branch
      %27 = sbr.rel (0) target = $region13
    $region12: #{loss_update.1} parent=1 // pred_region
      %s29 = ssub.s32 8192, 8192
      %30 = vsyncadd [#allocation7], %s29
      %s31 = sshll.u32 [#allocation6], 4
      %s32 = int_to_ptr.vmem [resolvable:$true] %s31
      %37 = dma.hbm_to_vmem [thread:$0]  %s2, 8192, %s32, [#allocation7], 1024, 1024, 64
    $region13: #{loss_update.1} parent=1 // pred_fallthru
      _
    // Predicated region
    $region14: #{loss_update.1} parent=1 // pred_check
      _
    $region15: #{loss_update.1} parent=1 // pred_check_branch
      %39 = sbr.rel (0) target = $region17
    $region16: #{loss_update.1} parent=1 // pred_region
      %40 = dma.done [#allocation4], 8192
    $region17: #{loss_update.1} parent=1 // pred_fallthru
      _
    // Predicated region
    $region18: #{loss_update.1} parent=1 // pred_check
      _
    $region19: #{loss_update.1} parent=1 // pred_check_branch
      %42 = sbr.rel (0) target = $region21
    $region20: #{loss_update.1} parent=1 // pred_region
      %43 = dma.done [#allocation7], 8192
    $region21: #{loss_update.1} parent=1 // pred_fallthru
      _
    %s44 = sld [smem:[#allocation2]]
    %v45 = vld [vmem:[#allocation3] sm:$0xff]
    %v46 = vld [vmem:[#allocation3 + $0x8] sm:$0xff]
    %v47 = vld [vmem:[#allocation3 + $0x10] sm:$0xff]
    %v48 = vld [vmem:[#allocation3 + $0x18] sm:$0xff]
    %v49 = vld [vmem:[#allocation3 + $0x20] sm:$0xff]
    %v50 = vld [vmem:[#allocation3 + $0x28] sm:$0xff]
    %v51 = vld [vmem:[#allocation3 + $0x30] sm:$0xff]
    %v52 = vld [vmem:[#allocation3 + $0x38] sm:$0xff]
    %v53 = vld [vmem:[#allocation3 + $0x40] sm:$0xff]
    %v54 = vld [vmem:[#allocation3 + $0x48] sm:$0xff]
    %v55 = vld [vmem:[#allocation3 + $0x50] sm:$0xff]
    %v56 = vld [vmem:[#allocation3 + $0x58] sm:$0xff]
    %v57 = vld [vmem:[#allocation3 + $0x60] sm:$0xff]
    %v58 = vld [vmem:[#allocation3 + $0x68] sm:$0xff]
    %v59 = vld [vmem:[#allocation3 + $0x70] sm:$0xff]
    %v60 = vld [vmem:[#allocation3 + $0x78] sm:$0xff]
    %v61 = vld [vmem:[#allocation3 + $0x80] sm:$0xff]
    %v62 = vld [vmem:[#allocation3 + $0x88] sm:$0xff]
    %v63 = vld [vmem:[#allocation3 + $0x90] sm:$0xff]
    %v64 = vld [vmem:[#allocation3 + $0x98] sm:$0xff]
    %v65 = vld [vmem:[#allocation3 + $0xa0] sm:$0xff]
    %v66 = vld [vmem:[#allocation3 + $0xa8] sm:$0xff]
    %v67 = vld [vmem:[#allocation3 + $0xb0] sm:$0xff]
    %v68 = vld [vmem:[#allocation3 + $0xb8] sm:$0xff]
    %v69 = vld [vmem:[#allocation3 + $0xc0] sm:$0xff]
    %v70 = vld [vmem:[#allocation3 + $0xc8] sm:$0xff]
    %v71 = vld [vmem:[#allocation3 + $0xd0] sm:$0xff]
    %v72 = vld [vmem:[#allocation3 + $0xd8] sm:$0xff]
    %v73 = vld [vmem:[#allocation3 + $0xe0] sm:$0xff]
    %v74 = vld [vmem:[#allocation3 + $0xe8] sm:$0xff]
    %v75 = vld [vmem:[#allocation3 + $0xf0] sm:$0xff]
    %v76 = vld [vmem:[#allocation3 + $0xf8] sm:$0xff]
    %v77 = vld [vmem:[#allocation3 + $0x100] sm:$0xff]
    %v78 = vld [vmem:[#allocation3 + $0x108] sm:$0xff]
    %v79 = vld [vmem:[#allocation3 + $0x110] sm:$0xff]
    %v80 = vld [vmem:[#allocation3 + $0x118] sm:$0xff]
    %v81 = vld [vmem:[#allocation3 + $0x120] sm:$0xff]
    %v82 = vld [vmem:[#allocation3 + $0x128] sm:$0xff]
    %v83 = vld [vmem:[#allocation3 + $0x130] sm:$0xff]
    %v84 = vld [vmem:[#allocation3 + $0x138] sm:$0xff]
    %v85 = vld [vmem:[#allocation3 + $0x140] sm:$0xff]
    %v86 = vld [vmem:[#allocation3 + $0x148] sm:$0xff]
    %v87 = vld [vmem:[#allocation3 + $0x150] sm:$0xff]
    %v88 = vld [vmem:[#allocation3 + $0x158] sm:$0xff]
    %v89 = vld [vmem:[#allocation3 + $0x160] sm:$0xff]
    %v90 = vld [vmem:[#allocation3 + $0x168] sm:$0xff]
    %v91 = vld [vmem:[#allocation3 + $0x170] sm:$0xff]
    %v92 = vld [vmem:[#allocation3 + $0x178] sm:$0xff]
    %v93 = vld [vmem:[#allocation3 + $0x180] sm:$0xff]
    %v94 = vld [vmem:[#allocation3 + $0x188] sm:$0xff]
    %v95 = vld [vmem:[#allocation3 + $0x190] sm:$0xff]
    %v96 = vld [vmem:[#allocation3 + $0x198] sm:$0xff]
    %v97 = vld [vmem:[#allocation3 + $0x1a0] sm:$0xff]
    %v98 = vld [vmem:[#allocation3 + $0x1a8] sm:$0xff]
    %v99 = vld [vmem:[#allocation3 + $0x1b0] sm:$0xff]
    %v100 = vld [vmem:[#allocation3 + $0x1b8] sm:$0xff]
    %v101 = vld [vmem:[#allocation3 + $0x1c0] sm:$0xff]
    %v102 = vld [vmem:[#allocation3 + $0x1c8] sm:$0xff]
    %v103 = vld [vmem:[#allocation3 + $0x1d0] sm:$0xff]
    %v104 = vld [vmem:[#allocation3 + $0x1d8] sm:$0xff]
    %v105 = vld [vmem:[#allocation3 + $0x1e0] sm:$0xff]
    %v106 = vld [vmem:[#allocation3 + $0x1e8] sm:$0xff]
    %v107 = vld [vmem:[#allocation3 + $0x1f0] sm:$0xff]
    %v108 = vld [vmem:[#allocation3 + $0x1f8] sm:$0xff]
    %v109 = vld [vmem:[#allocation6] sm:$0xff]
    %v110 = vld [vmem:[#allocation6 + $0x8] sm:$0xff]
    %v111 = vld [vmem:[#allocation6 + $0x10] sm:$0xff]
    %v112 = vld [vmem:[#allocation6 + $0x18] sm:$0xff]
    %v113 = vld [vmem:[#allocation6 + $0x20] sm:$0xff]
    %v114 = vld [vmem:[#allocation6 + $0x28] sm:$0xff]
    %v115 = vld [vmem:[#allocation6 + $0x30] sm:$0xff]
    %v116 = vld [vmem:[#allocation6 + $0x38] sm:$0xff]
    %v117 = vld [vmem:[#allocation6 + $0x40] sm:$0xff]
    %v118 = vld [vmem:[#allocation6 + $0x48] sm:$0xff]
    %v119 = vld [vmem:[#allocation6 + $0x50] sm:$0xff]
    %v120 = vld [vmem:[#allocation6 + $0x58] sm:$0xff]
    %v121 = vld [vmem:[#allocation6 + $0x60] sm:$0xff]
    %v122 = vld [vmem:[#allocation6 + $0x68] sm:$0xff]
    %v123 = vld [vmem:[#allocation6 + $0x70] sm:$0xff]
    %v124 = vld [vmem:[#allocation6 + $0x78] sm:$0xff]
    %v125 = vld [vmem:[#allocation6 + $0x80] sm:$0xff]
    %v126 = vld [vmem:[#allocation6 + $0x88] sm:$0xff]
    %v127 = vld [vmem:[#allocation6 + $0x90] sm:$0xff]
    %v128 = vld [vmem:[#allocation6 + $0x98] sm:$0xff]
    %v129 = vld [vmem:[#allocation6 + $0xa0] sm:$0xff]
    %v130 = vld [vmem:[#allocation6 + $0xa8] sm:$0xff]
    %v131 = vld [vmem:[#allocation6 + $0xb0] sm:$0xff]
    %v132 = vld [vmem:[#allocation6 + $0xb8] sm:$0xff]
    %v133 = vld [vmem:[#allocation6 + $0xc0] sm:$0xff]
    %v134 = vld [vmem:[#allocation6 + $0xc8] sm:$0xff]
    %v135 = vld [vmem:[#allocation6 + $0xd0] sm:$0xff]
    %v136 = vld [vmem:[#allocation6 + $0xd8] sm:$0xff]
    %v137 = vld [vmem:[#allocation6 + $0xe0] sm:$0xff]
    %v138 = vld [vmem:[#allocation6 + $0xe8] sm:$0xff]
    %v139 = vld [vmem:[#allocation6 + $0xf0] sm:$0xff]
    %v140 = vld [vmem:[#allocation6 + $0xf8] sm:$0xff]
    %v141 = vld [vmem:[#allocation6 + $0x100] sm:$0xff]
    %v142 = vld [vmem:[#allocation6 + $0x108] sm:$0xff]
    %v143 = vld [vmem:[#allocation6 + $0x110] sm:$0xff]
    %v144 = vld [vmem:[#allocation6 + $0x118] sm:$0xff]
    %v145 = vld [vmem:[#allocation6 + $0x120] sm:$0xff]
    %v146 = vld [vmem:[#allocation6 + $0x128] sm:$0xff]
    %v147 = vld [vmem:[#allocation6 + $0x130] sm:$0xff]
    %v148 = vld [vmem:[#allocation6 + $0x138] sm:$0xff]
    %v149 = vld [vmem:[#allocation6 + $0x140] sm:$0xff]
    %v150 = vld [vmem:[#allocation6 + $0x148] sm:$0xff]
    %v151 = vld [vmem:[#allocation6 + $0x150] sm:$0xff]
    %v152 = vld [vmem:[#allocation6 + $0x158] sm:$0xff]
    %v153 = vld [vmem:[#allocation6 + $0x160] sm:$0xff]
    %v154 = vld [vmem:[#allocation6 + $0x168] sm:$0xff]
    %v155 = vld [vmem:[#allocation6 + $0x170] sm:$0xff]
    %v156 = vld [vmem:[#allocation6 + $0x178] sm:$0xff]
    %v157 = vld [vmem:[#allocation6 + $0x180] sm:$0xff]
    %v158 = vld [vmem:[#allocation6 + $0x188] sm:$0xff]
    %v159 = vld [vmem:[#allocation6 + $0x190] sm:$0xff]
    %v160 = vld [vmem:[#allocation6 + $0x198] sm:$0xff]
    %v161 = vld [vmem:[#allocation6 + $0x1a0] sm:$0xff]
    %v162 = vld [vmem:[#allocation6 + $0x1a8] sm:$0xff]
    %v163 = vld [vmem:[#allocation6 + $0x1b0] sm:$0xff]
    %v164 = vld [vmem:[#allocation6 + $0x1b8] sm:$0xff]
    %v165 = vld [vmem:[#allocation6 + $0x1c0] sm:$0xff]
    %v166 = vld [vmem:[#allocation6 + $0x1c8] sm:$0xff]
    %v167 = vld [vmem:[#allocation6 + $0x1d0] sm:$0xff]
    %v168 = vld [vmem:[#allocation6 + $0x1d8] sm:$0xff]
    %v169 = vld [vmem:[#allocation6 + $0x1e0] sm:$0xff]
    %v170 = vld [vmem:[#allocation6 + $0x1e8] sm:$0xff]
    %v171 = vld [vmem:[#allocation6 + $0x1f0] sm:$0xff]
    %v172 = vld [vmem:[#allocation6 + $0x1f8] sm:$0xff]
    %v173 = vstv %s44
    %v174 = vmul.f32 %v109, %v173
    %v175 = vmul.f32 %v110, %v173
    %v176 = vmul.f32 %v111, %v173
    %v177 = vmul.f32 %v112, %v173
    %v178 = vmul.f32 %v113, %v173
    %v179 = vmul.f32 %v114, %v173
    %v180 = vmul.f32 %v115, %v173
    %v181 = vmul.f32 %v116, %v173
    %v182 = vmul.f32 %v117, %v173
    %v183 = vmul.f32 %v118, %v173
    %v184 = vmul.f32 %v119, %v173
    %v185 = vmul.f32 %v120, %v173
    %v186 = vmul.f32 %v121, %v173
    %v187 = vmul.f32 %v122, %v173
    %v188 = vmul.f32 %v123, %v173
    %v189 = vmul.f32 %v124, %v173
    %v190 = vmul.f32 %v125, %v173
    %v191 = vmul.f32 %v126, %v173
    %v192 = vmul.f32 %v127, %v173
    %v193 = vmul.f32 %v128, %v173
    %v194 = vmul.f32 %v129, %v173
    %v195 = vmul.f32 %v130, %v173
    %v196 = vmul.f32 %v131, %v173
    %v197 = vmul.f32 %v132, %v173
    %v198 = vmul.f32 %v133, %v173
    %v199 = vmul.f32 %v134, %v173
    %v200 = vmul.f32 %v135, %v173
    %v201 = vmul.f32 %v136, %v173
    %v202 = vmul.f32 %v137, %v173
    %v203 = vmul.f32 %v138, %v173
    %v204 = vmul.f32 %v139, %v173
    %v205 = vmul.f32 %v140, %v173
    %v206 = vmul.f32 %v141, %v173
    %v207 = vmul.f32 %v142, %v173
    %v208 = vmul.f32 %v143, %v173
    %v209 = vmul.f32 %v144, %v173
    %v210 = vmul.f32 %v145, %v173
    %v211 = vmul.f32 %v146, %v173
    %v212 = vmul.f32 %v147, %v173
    %v213 = vmul.f32 %v148, %v173
    %v214 = vmul.f32 %v149, %v173
    %v215 = vmul.f32 %v150, %v173
    %v216 = vmul.f32 %v151, %v173
    %v217 = vmul.f32 %v152, %v173
    %v218 = vmul.f32 %v153, %v173
    %v219 = vmul.f32 %v154, %v173
    %v220 = vmul.f32 %v155, %v173
    %v221 = vmul.f32 %v156, %v173
    %v222 = vmul.f32 %v157, %v173
    %v223 = vmul.f32 %v158, %v173
    %v224 = vmul.f32 %v159, %v173
    %v225 = vmul.f32 %v160, %v173
    %v226 = vmul.f32 %v161, %v173
    %v227 = vmul.f32 %v162, %v173
    %v228 = vmul.f32 %v163, %v173
    %v229 = vmul.f32 %v164, %v173
    %v230 = vmul.f32 %v165, %v173
    %v231 = vmul.f32 %v166, %v173
    %v232 = vmul.f32 %v167, %v173
    %v233 = vmul.f32 %v168, %v173
    %v234 = vmul.f32 %v169, %v173
    %v235 = vmul.f32 %v170, %v173
    %v236 = vmul.f32 %v171, %v173
    %v237 = vmul.f32 %v172, %v173
    %v238 = vadd.f32 %v45, %v174
    %v239 = vadd.f32 %v46, %v175
    %v240 = vadd.f32 %v47, %v176
    %v241 = vadd.f32 %v48, %v177
    %v242 = vadd.f32 %v49, %v178
    %v243 = vadd.f32 %v50, %v179
    %v244 = vadd.f32 %v51, %v180
    %v245 = vadd.f32 %v52, %v181
    %v246 = vadd.f32 %v53, %v182
    %v247 = vadd.f32 %v54, %v183
    %v248 = vadd.f32 %v55, %v184
    %v249 = vadd.f32 %v56, %v185
    %v250 = vadd.f32 %v57, %v186
    %v251 = vadd.f32 %v58, %v187
    %v252 = vadd.f32 %v59, %v188
    %v253 = vadd.f32 %v60, %v189
    %v254 = vadd.f32 %v61, %v190
    %v255 = vadd.f32 %v62, %v191
    %v256 = vadd.f32 %v63, %v192
    %v257 = vadd.f32 %v64, %v193
    %v258 = vadd.f32 %v65, %v194
    %v259 = vadd.f32 %v66, %v195
    %v260 = vadd.f32 %v67, %v196
    %v261 = vadd.f32 %v68, %v197
    %v262 = vadd.f32 %v69, %v198
    %v263 = vadd.f32 %v70, %v199
    %v264 = vadd.f32 %v71, %v200
    %v265 = vadd.f32 %v72, %v201
    %v266 = vadd.f32 %v73, %v202
    %v267 = vadd.f32 %v74, %v203
    %v268 = vadd.f32 %v75, %v204
    %v269 = vadd.f32 %v76, %v205
    %v270 = vadd.f32 %v77, %v206
    %v271 = vadd.f32 %v78, %v207
    %v272 = vadd.f32 %v79, %v208
    %v273 = vadd.f32 %v80, %v209
    %v274 = vadd.f32 %v81, %v210
    %v275 = vadd.f32 %v82, %v211
    %v276 = vadd.f32 %v83, %v212
    %v277 = vadd.f32 %v84, %v213
    %v278 = vadd.f32 %v85, %v214
    %v279 = vadd.f32 %v86, %v215
    %v280 = vadd.f32 %v87, %v216
    %v281 = vadd.f32 %v88, %v217
    %v282 = vadd.f32 %v89, %v218
    %v283 = vadd.f32 %v90, %v219
    %v284 = vadd.f32 %v91, %v220
    %v285 = vadd.f32 %v92, %v221
    %v286 = vadd.f32 %v93, %v222
    %v287 = vadd.f32 %v94, %v223
    %v288 = vadd.f32 %v95, %v224
    %v289 = vadd.f32 %v96, %v225
    %v290 = vadd.f32 %v97, %v226
    %v291 = vadd.f32 %v98, %v227
    %v292 = vadd.f32 %v99, %v228
    %v293 = vadd.f32 %v100, %v229
    %v294 = vadd.f32 %v101, %v230
    %v295 = vadd.f32 %v102, %v231
    %v296 = vadd.f32 %v103, %v232
    %v297 = vadd.f32 %v104, %v233
    %v298 = vadd.f32 %v105, %v234
    %v299 = vadd.f32 %v106, %v235
    %v300 = vadd.f32 %v107, %v236
    %v301 = vadd.f32 %v108, %v237
    %302 = vst [vmem:[#allocation8] sm:$0xff] %v238
    %303 = vst [vmem:[#allocation8 + $0x8] sm:$0xff] %v239
    %304 = vst [vmem:[#allocation8 + $0x10] sm:$0xff] %v240
    %305 = vst [vmem:[#allocation8 + $0x18] sm:$0xff] %v241
    %306 = vst [vmem:[#allocation8 + $0x20] sm:$0xff] %v242
    %307 = vst [vmem:[#allocation8 + $0x28] sm:$0xff] %v243
    %308 = vst [vmem:[#allocation8 + $0x30] sm:$0xff] %v244
    %309 = vst [vmem:[#allocation8 + $0x38] sm:$0xff] %v245
    %310 = vst [vmem:[#allocation8 + $0x40] sm:$0xff] %v246
    %311 = vst [vmem:[#allocation8 + $0x48] sm:$0xff] %v247
    %312 = vst [vmem:[#allocation8 + $0x50] sm:$0xff] %v248
    %313 = vst [vmem:[#allocation8 + $0x58] sm:$0xff] %v249
    %314 = vst [vmem:[#allocation8 + $0x60] sm:$0xff] %v250
    %315 = vst [vmem:[#allocation8 + $0x68] sm:$0xff] %v251
    %316 = vst [vmem:[#allocation8 + $0x70] sm:$0xff] %v252
    %317 = vst [vmem:[#allocation8 + $0x78] sm:$0xff] %v253
    %318 = vst [vmem:[#allocation8 + $0x80] sm:$0xff] %v254
    %319 = vst [vmem:[#allocation8 + $0x88] sm:$0xff] %v255
    %320 = vst [vmem:[#allocation8 + $0x90] sm:$0xff] %v256
    %321 = vst [vmem:[#allocation8 + $0x98] sm:$0xff] %v257
    %322 = vst [vmem:[#allocation8 + $0xa0] sm:$0xff] %v258
    %323 = vst [vmem:[#allocation8 + $0xa8] sm:$0xff] %v259
    %324 = vst [vmem:[#allocation8 + $0xb0] sm:$0xff] %v260
    %325 = vst [vmem:[#allocation8 + $0xb8] sm:$0xff] %v261
    %326 = vst [vmem:[#allocation8 + $0xc0] sm:$0xff] %v262
    %327 = vst [vmem:[#allocation8 + $0xc8] sm:$0xff] %v263
    %328 = vst [vmem:[#allocation8 + $0xd0] sm:$0xff] %v264
    %329 = vst [vmem:[#allocation8 + $0xd8] sm:$0xff] %v265
    %330 = vst [vmem:[#allocation8 + $0xe0] sm:$0xff] %v266
    %331 = vst [vmem:[#allocation8 + $0xe8] sm:$0xff] %v267
    %332 = vst [vmem:[#allocation8 + $0xf0] sm:$0xff] %v268
    %333 = vst [vmem:[#allocation8 + $0xf8] sm:$0xff] %v269
    %334 = vst [vmem:[#allocation8 + $0x100] sm:$0xff] %v270
    %335 = vst [vmem:[#allocation8 + $0x108] sm:$0xff] %v271
    %336 = vst [vmem:[#allocation8 + $0x110] sm:$0xff] %v272
    %337 = vst [vmem:[#allocation8 + $0x118] sm:$0xff] %v273
    %338 = vst [vmem:[#allocation8 + $0x120] sm:$0xff] %v274
    %339 = vst [vmem:[#allocation8 + $0x128] sm:$0xff] %v275
    %340 = vst [vmem:[#allocation8 + $0x130] sm:$0xff] %v276
    %341 = vst [vmem:[#allocation8 + $0x138] sm:$0xff] %v277
    %342 = vst [vmem:[#allocation8 + $0x140] sm:$0xff] %v278
    %343 = vst [vmem:[#allocation8 + $0x148] sm:$0xff] %v279
    %344 = vst [vmem:[#allocation8 + $0x150] sm:$0xff] %v280
    %345 = vst [vmem:[#allocation8 + $0x158] sm:$0xff] %v281
    %346 = vst [vmem:[#allocation8 + $0x160] sm:$0xff] %v282
    %347 = vst [vmem:[#allocation8 + $0x168] sm:$0xff] %v283
    %348 = vst [vmem:[#allocation8 + $0x170] sm:$0xff] %v284
    %349 = vst [vmem:[#allocation8 + $0x178] sm:$0xff] %v285
    %350 = vst [vmem:[#allocation8 + $0x180] sm:$0xff] %v286
    %351 = vst [vmem:[#allocation8 + $0x188] sm:$0xff] %v287
    %352 = vst [vmem:[#allocation8 + $0x190] sm:$0xff] %v288
    %353 = vst [vmem:[#allocation8 + $0x198] sm:$0xff] %v289
    %354 = vst [vmem:[#allocation8 + $0x1a0] sm:$0xff] %v290
    %355 = vst [vmem:[#allocation8 + $0x1a8] sm:$0xff] %v291
    %356 = vst [vmem:[#allocation8 + $0x1b0] sm:$0xff] %v292
    %357 = vst [vmem:[#allocation8 + $0x1b8] sm:$0xff] %v293
    %358 = vst [vmem:[#allocation8 + $0x1c0] sm:$0xff] %v294
    %359 = vst [vmem:[#allocation8 + $0x1c8] sm:$0xff] %v295
    %360 = vst [vmem:[#allocation8 + $0x1d0] sm:$0xff] %v296
    %361 = vst [vmem:[#allocation8 + $0x1d8] sm:$0xff] %v297
    %362 = vst [vmem:[#allocation8 + $0x1e0] sm:$0xff] %v298
    %363 = vst [vmem:[#allocation8 + $0x1e8] sm:$0xff] %v299
    %364 = vst [vmem:[#allocation8 + $0x1f0] sm:$0xff] %v300
    %365 = vst [vmem:[#allocation8 + $0x1f8] sm:$0xff] %v301
    // Predicated region
    $region22: #{loss_update.1} parent=1 // pred_check
      _
    $region23: #{loss_update.1} parent=1 // pred_check_branch
      %367 = sbr.rel (0) target = $region25
    $region24: #{loss_update.1} parent=1 // pred_region
      %s369 = ssub.s32 8192, 8192
      %370 = vsyncadd [#allocation5], %s369
      %s371 = sshll.u32 [#allocation8], 4
      %s372 = int_to_ptr.vmem [resolvable:$true] %s371
      %377 = dma.vmem_to_hbm [thread:$0]  %s372, 8192, %s3, [#allocation5], 1024, 1024, 64
    $region25: #{loss_update.1} parent=1 // pred_fallthru
      _
    // Predicated region
    $region26: #{loss_update.1} parent=1 // pred_check
      _
    $region27: #{loss_update.1} parent=1 // pred_check_branch
      %379 = sbr.rel (0) target = $region29
    $region28: #{loss_update.1} parent=1 // pred_region
      %380 = dma.done [#allocation5], 8192
    $region29: #{loss_update.1} parent=1 // pred_fallthru
      _
    %381 = vsyncpa [#allocation4], 1
    %382 = vsyncpa [#allocation7], 1
    %383 = vsyncpa [#allocation5], 1

</llo_original>
